<compile_context>
chip_gen: v7x
topology: tpu7x:2x2x1
jax: 0.10.0
libtpu: 0.0.40
codegen_flags: <defaults>
</compile_context>

<pallas_src>
import jax
import jax.numpy as jnp
from jax.experimental import pallas as pl
from jax.experimental.pallas import tpu as pltpu

D_IN, D_H1, D_H2, NUM_LABELS = 768, 512, 256, 2
OUT_PAD = 128  # classifier output padded to a full lane width


def _round_up(x, m):
    return (x + m - 1) // m * m


def _head_kernel(x_ref, w_ref, b_ref, out_ref):
    # Fused (folded) head: one MXU matmul, f32 accumulation, f32 bias.
    x = x_ref[...].astype(w_ref.dtype)                          # f32 -> bf16 (VPU)
    logits = jnp.dot(x, w_ref[...],
                     preferred_element_type=jnp.float32) + b_ref[...]
    out_ref[...] = logits.astype(out_ref.dtype)


def fold_params(params, compute_dtype=jnp.bfloat16):
    """Fold Linear(768,512) -> Linear(512,256) -> Linear(256,2) into one matmul.

    Valid because there is no nonlinearity between the layers and Dropout(0.1) is
    identity at inference.  The products are taken in f32 and the folded weight is
    cast to bf16 exactly once -- call this at model-load time, NOT per forward pass.
    TODO(synk): not valid for training-mode dropout between layer 2 and the classifier.
    """
    w1, b1 = params["w1"].astype(jnp.float32), params["b1"].astype(jnp.float32)
    w2, b2 = params["w2"].astype(jnp.float32), params["b2"].astype(jnp.float32)
    w3, b3 = params["w3"].astype(jnp.float32), params["b3"].astype(jnp.float32)

    # Lane-dense classifier: pad [256, 2] -> [256, 128]; padded output columns are 0.
    w3p = jnp.pad(w3, ((0, 0), (0, OUT_PAD - NUM_LABELS)))
    b3p = jnp.pad(b3, ((0, 0), (0, OUT_PAD - NUM_LABELS)))

    w_eff = (w1 @ w2) @ w3p                                     # [768, 128] f32
    b_eff = (b1 @ w2 + b2) @ w3p + b3p                          # [1, 128]   f32
    return {"w_eff": w_eff.astype(compute_dtype), "b_eff": b_eff}


def _default_tile_b(B):
    # grid >= 2 for B >= 256 so v7x can shard the "parallel" batch axis over its 2 TCs;
    # tiles sized ceil(B / n_tiles) (always <= 512 rows) so last-tile waste is tiny;
    # rounded to 16 sublanes (bf16 packing), clamped for tiny batches.
    n_tiles = pl.cdiv(B, 512)
    if B >= 256:
        n_tiles = max(n_tiles, 2)
    tb = _round_up(pl.cdiv(B, n_tiles), 16)
    return max(8, min(tb, _round_up(B, 8)))


def binary_classification_head(pooler_output, folded, *, tile_b=None):
    """pooler_output: [B, 768] f32.  folded: output of fold_params() (cached)."""
    B = pooler_output.shape[0]
    tb = _default_tile_b(B) if tile_b is None else tile_b
    grid = (pl.cdiv(B, tb),)

    w_eff, b_eff = folded["w_eff"], folded["b_eff"]

    flops = 2 * B * D_IN * OUT_PAD
    bytes_accessed = int(
        pooler_output.size * pooler_output.dtype.itemsize
        + w_eff.size * w_eff.dtype.itemsize
        + b_eff.size * 4
        + B * OUT_PAD * 4)

    out = pl.pallas_call(
        _head_kernel,
        out_shape=jax.ShapeDtypeStruct((B, OUT_PAD), jnp.float32),
        grid_spec=pltpu.PrefetchScalarGridSpec(
            num_scalar_prefetch=0,
            grid=grid,
            in_specs=[
                pl.BlockSpec((tb, D_IN), lambda i: (i, 0)),         # x tile (f32)
                pl.BlockSpec((D_IN, OUT_PAD), lambda i: (0, 0)),    # folded W (VMEM-resident)
                pl.BlockSpec((1, OUT_PAD), lambda i: (0, 0)),       # folded bias
            ],
            out_specs=pl.BlockSpec((tb, OUT_PAD), lambda i: (i, 0)),
        ),
        compiler_params=pltpu.CompilerParams(
            dimension_semantics=("parallel",)),
        cost_estimate=pl.CostEstimate(
            flops=flops, transcendentals=0, bytes_accessed=bytes_accessed),
    )(pooler_output, w_eff, b_eff)

    return out[:, :NUM_LABELS]


def _init_linear(key, fan_in, fan_out):
    """torch.nn.Linear-style init: U(-1/sqrt(fan_in), 1/sqrt(fan_in)).

    Returns W with shape [fan_in, fan_out] (transposed vs. torch storage), b [1, fan_out].
    """
    kw, kb = jax.random.split(key)
    bound = 1.0 / jnp.sqrt(fan_in)
    w = jax.random.uniform(kw, (fan_in, fan_out), jnp.float32, -bound, bound)
    b = jax.random.uniform(kb, (1, fan_out), jnp.float32, -bound, bound)
    return w, b


def make_params(key):
    k1, k2, k3 = jax.random.split(key, 3)
    w1, b1 = _init_linear(k1, D_IN, D_H1)
    w2, b2 = _init_linear(k2, D_H1, D_H2)
    w3, b3 = _init_linear(k3, D_H2, NUM_LABELS)
    return {"w1": w1, "b1": b1, "w2": w2, "b2": b2, "w3": w3, "b3": b3}


def reference_head_folded(x, folded):
    """Same math as the kernel (bf16 x / folded W, f32 accumulation) for a tight check."""
    xb = x.astype(folded["w_eff"].dtype)
    out = jnp.dot(xb, folded["w_eff"], preferred_element_type=jnp.float32) + folded["b_eff"]
    return out[:, :NUM_LABELS]


def reference_head_f32(x, p):
    """Torch-equivalent sequential f32 math (eval-mode dropout = identity)."""
    h = x @ p["w1"] + p["b1"]
    h = h @ p["w2"] + p["b2"]
    return h @ p["w3"] + p["b3"]


if __name__ == "__main__":
    key = jax.random.PRNGKey(0)
    k_params, k_x = jax.random.split(key)

    params = make_params(k_params)
    folded = fold_params(params)            # once, at "model load" time (not per call)

    # Small batch; stands in for bert(input_ids, attention_mask).pooler_output.
    B = 32
    pooler_output = jax.random.normal(k_x, (B, D_IN), jnp.float32)

    logits = binary_classification_head(pooler_output, folded)
    logits = jax.block_until_ready(logits)
    assert logits.shape == (B, NUM_LABELS)

    # Matched-precision reference (bf16 operands on the folded weight, f32 accumulation).
    ref = reference_head_folded(pooler_output, folded)
    assert jnp.allclose(logits, ref, atol=1e-2, rtol=1e-2), "mismatch vs. folded bf16 reference"

    # Looser sanity check against the pure-f32 torch-equivalent 3-layer math.
    ref32 = reference_head_f32(pooler_output, params)
    assert jnp.allclose(logits, ref32, atol=5e-2, rtol=5e-2), "mismatch vs. f32 reference"

    print("KERNEL_OK")
</pallas_src>

<mosaic_0001>
module attributes {stable_mosaic.version = 11 : i64} {
  func.func @_head_kernel(%arg0: i32, %arg1: memref<32x768xf32, #tpu.memory_space<vmem>>, %arg2: memref<768x128xbf16, #tpu.memory_space<vmem>>, %arg3: memref<1x128xf32, #tpu.memory_space<vmem>>, %arg4: memref<32x128xf32, #tpu.memory_space<vmem>>) attributes {dimension_semantics = [#tpu.dimension_semantics<parallel>], iteration_bounds = array<i64: 1>, scalar_prefetch = 0 : i64, scratch_operands = 0 : i64, tpu.core_type = #tpu.core_type<tc>, window_params = [{transform_indices = @transform_0, window_bounds = array<i64: 32, 768>}, {pipeline_mode = #tpu.pipeline_mode<synchronous>, transform_indices = @transform_1, window_bounds = array<i64: 768, 128>}, {pipeline_mode = #tpu.pipeline_mode<synchronous>, transform_indices = @transform_2, window_bounds = array<i64: 1, 128>}, {transform_indices = @transform_3, window_bounds = array<i64: 32, 128>}]} {
    %c0 = arith.constant 0 : index
    %c0_0 = arith.constant 0 : index
    %0 = vector.load %arg1[%c0, %c0_0] : memref<32x768xf32, #tpu.memory_space<vmem>>, vector<32x768xf32>
    %1 = arith.truncf %0 : vector<32x768xf32> to vector<32x768xbf16>
    %c0_1 = arith.constant 0 : index
    %c0_2 = arith.constant 0 : index
    %2 = vector.load %arg2[%c0_1, %c0_2] : memref<768x128xbf16, #tpu.memory_space<vmem>>, vector<768x128xbf16>
    %cst = arith.constant dense<0.000000e+00> : vector<32x128xf32>
    %3 = tpu.matmul %1, %2, %cst {dimension_numbers = #tpu.dot_dimension_numbers<[1], [0], [0], [1], [0, 0, 1, 1], [], []>} : vector<32x768xbf16>, vector<768x128xbf16>, vector<32x128xf32> -> vector<32x128xf32>
    %c0_3 = arith.constant 0 : index
    %c0_4 = arith.constant 0 : index
    %4 = vector.load %arg3[%c0_3, %c0_4] : memref<1x128xf32, #tpu.memory_space<vmem>>, vector<1x128xf32>
    %5 = vector.broadcast %4 : vector<1x128xf32> to vector<32x128xf32>
    %6 = arith.addf %3, %5 : vector<32x128xf32>
    %c0_5 = arith.constant 0 : index
    %c0_6 = arith.constant 0 : index
    %7 = vector.load %arg4[%c0_5, %c0_6] : memref<32x128xf32, #tpu.memory_space<vmem>>, vector<32x128xf32>
    tpu.vector_store %arg4[%c0_5, %c0_6], %6 {strides = array<i32>} : memref<32x128xf32, #tpu.memory_space<vmem>>, vector<32x128xf32>,
    return
  }
  func.func @transform_0(%arg0: i32) -> (i32, i32) {
    %c0_i32 = arith.constant 0 : i32
    %c0_i32_0 = arith.constant 0 : i32
    return %arg0, %c0_i32 : i32, i32
  }
  func.func @transform_1(%arg0: i32) -> (i32, i32) {
    %c0_i32 = arith.constant 0 : i32
    %c0_i32_0 = arith.constant 0 : i32
    %c0_i32_1 = arith.constant 0 : i32
    return %c0_i32, %c0_i32_0 : i32, i32
  }
  func.func @transform_2(%arg0: i32) -> (i32, i32) {
    %c0_i32 = arith.constant 0 : i32
    %c0_i32_0 = arith.constant 0 : i32
    %c0_i32_1 = arith.constant 0 : i32
    return %c0_i32, %c0_i32_0 : i32, i32
  }
  func.func @transform_3(%arg0: i32) -> (i32, i32) {
    %c0_i32 = arith.constant 0 : i32
    %c0_i32_0 = arith.constant 0 : i32
    return %arg0, %c0_i32 : i32, i32
  }
}

</mosaic_0001>

<llo_original>
// kernel: tpu_custom_call.1
$region0: #{tpu_custom_call.1}
  #allocation0 [shape = 'u32[]', space=smem, size = 0x4, offset = 0x4, fixed_abs, tag = 'smem constant byte address 0x4 - core index']
  #allocation1 [shape = 'u32[144,128]{1,0:T(1,128)}', space=vmem, size = 0x12000, scoped, tag = 'internal scratch']
  %s0 = inlined_call_operand.hbm [shape: f32[32,768], index: 0, kind: input, shape index: {}]
  %s1 = inlined_call_operand.hbm [shape: bf16[768,128], index: 1, kind: input, shape index: {}]
  %s2 = inlined_call_operand.vmem [shape: f32[1,128], index: 2, kind: input, shape index: {}]
  %s3 = inlined_call_operand.hbm [shape: f32[32,128], index: 3, kind: output, shape index: {}]
  %s4 = sld [smem:[#allocation0]]
  $region30: #{tpu_custom_call.1} parent=0
    _
  %s6 = ssub.s32 1, %s4
  %s7 = scalar_select 0, %s6, %s4
  $region1: #{tpu_custom_call.1} parent=0
    #allocation2 [shape = 'u8[98304]{0}', space=vmem, size = 0x18000, scoped, tag = 'input window, operand 0, single buffered']
    #allocation3 [shape = 's32[1]{0}', space=sflag, size = 0x4, scoped, tag = 'scoped memory for tpu_custom_call.1']
    #allocation4 [shape = 's32[1]{0}', space=sflag, size = 0x4, scoped, tag = 'scoped memory for tpu_custom_call.1']
    #allocation5 [shape = 'u8[196608]{0}', space=vmem, size = 0x30000, scoped, tag = 'input window, operand 1, single buffered']
    #allocation6 [shape = 's32[1]{0}', space=sflag, size = 0x4, scoped, tag = 'scoped memory for tpu_custom_call.1']
    #allocation7 [shape = 'u8[16384]{0}', space=vmem, size = 0x4000, scoped, tag = 'output window, operand 0, single buffered']
    %8 = vsyncpa [#allocation3], 0
    %9 = vsyncpa [#allocation6], 0
    %10 = vsyncpa [#allocation4], 0
    // Predicated region
    $region2: #{tpu_custom_call.1} parent=1 // pred_check
      _
    $region3: #{tpu_custom_call.1} parent=1 // pred_check_branch
      %12 = sbr.rel (0) target = $region5
    $region4: #{tpu_custom_call.1} parent=1 // pred_region
      %s14 = ssub.s32 3072, 3072
      %15 = vsyncadd [#allocation3], %s14
      %s16 = sshll.u32 [#allocation2], 4
      %s17 = int_to_ptr.vmem [resolvable:$true] %s16
      %22 = dma.hbm_to_vmem [thread:$0]  %s0, 3072, %s17, [#allocation3], 768, 768, 48
    $region5: #{tpu_custom_call.1} parent=1 // pred_fallthru
      _
    // Predicated region
    $region6: #{tpu_custom_call.1} parent=1 // pred_check
      _
    $region7: #{tpu_custom_call.1} parent=1 // pred_check_branch
      %24 = sbr.rel (0) target = $region9
    $region8: #{tpu_custom_call.1} parent=1 // pred_region
      %s26 = ssub.s32 6144, 6144
      %27 = vsyncadd [#allocation6], %s26
      %s28 = sshll.u32 [#allocation5], 4
      %s29 = int_to_ptr.vmem [resolvable:$true] %s28
      %34 = dma.hbm_to_vmem [thread:$0]  %s1, 6144, %s29, [#allocation6], 64, 64, 4
    $region9: #{tpu_custom_call.1} parent=1 // pred_fallthru
      _
    // Predicated region
    $region10: #{tpu_custom_call.1} parent=1 // pred_check
      _
    $region11: #{tpu_custom_call.1} parent=1 // pred_check_branch
      %36 = sbr.rel (0) target = $region13
    $region12: #{tpu_custom_call.1} parent=1 // pred_region
      _
    $region13: #{tpu_custom_call.1} parent=1 // pred_fallthru
      _
    // Predicated region
    $region14: #{tpu_custom_call.1} parent=1 // pred_check
      _
    $region15: #{tpu_custom_call.1} parent=1 // pred_check_branch
      %38 = sbr.rel (0) target = $region17
    $region16: #{tpu_custom_call.1} parent=1 // pred_region
      %39 = dma.done [#allocation3], 3072
    $region17: #{tpu_custom_call.1} parent=1 // pred_fallthru
      _
    // Predicated region
    $region18: #{tpu_custom_call.1} parent=1 // pred_check
      _
    $region19: #{tpu_custom_call.1} parent=1 // pred_check_branch
      %41 = sbr.rel (0) target = $region21
    $region20: #{tpu_custom_call.1} parent=1 // pred_region
      %42 = dma.done [#allocation6], 6144
    $region21: #{tpu_custom_call.1} parent=1 // pred_fallthru
      _
    %v44 = vld [vmem:[#allocation2] sm:$0xff]
    %v45 = vld [vmem:[#allocation2 + $0x8] sm:$0xff]
    %v46 = vld [vmem:[#allocation2 + $0x10] sm:$0xff]
    %v47 = vld [vmem:[#allocation2 + $0x18] sm:$0xff]
    %v48 = vld [vmem:[#allocation2 + $0x20] sm:$0xff]
    %v49 = vld [vmem:[#allocation2 + $0x28] sm:$0xff]
    %v50 = vld [vmem:[#allocation2 + $0x30] sm:$0xff]
    %v51 = vld [vmem:[#allocation2 + $0x38] sm:$0xff]
    %v52 = vld [vmem:[#allocation2 + $0x40] sm:$0xff]
    %v53 = vld [vmem:[#allocation2 + $0x48] sm:$0xff]
    %v54 = vld [vmem:[#allocation2 + $0x50] sm:$0xff]
    %v55 = vld [vmem:[#allocation2 + $0x58] sm:$0xff]
    %v56 = vld [vmem:[#allocation2 + $0x60] sm:$0xff]
    %v57 = vld [vmem:[#allocation2 + $0x68] sm:$0xff]
    %v58 = vld [vmem:[#allocation2 + $0x70] sm:$0xff]
    %v59 = vld [vmem:[#allocation2 + $0x78] sm:$0xff]
    %v60 = vld [vmem:[#allocation2 + $0x80] sm:$0xff]
    %v61 = vld [vmem:[#allocation2 + $0x88] sm:$0xff]
    %v62 = vld [vmem:[#allocation2 + $0x90] sm:$0xff]
    %v63 = vld [vmem:[#allocation2 + $0x98] sm:$0xff]
    %v64 = vld [vmem:[#allocation2 + $0xa0] sm:$0xff]
    %v65 = vld [vmem:[#allocation2 + $0xa8] sm:$0xff]
    %v66 = vld [vmem:[#allocation2 + $0xb0] sm:$0xff]
    %v67 = vld [vmem:[#allocation2 + $0xb8] sm:$0xff]
    %v68 = vpack.c.bf16 %v50, %v44
    %v69 = vpack.c.bf16 %v51, %v45
    %v70 = vpack.c.bf16 %v52, %v46
    %v71 = vpack.c.bf16 %v53, %v47
    %v72 = vpack.c.bf16 %v54, %v48
    %v73 = vpack.c.bf16 %v55, %v49
    %v74 = vpack.c.bf16 %v62, %v56
    %v75 = vpack.c.bf16 %v63, %v57
    %v76 = vpack.c.bf16 %v64, %v58
    %v77 = vpack.c.bf16 %v65, %v59
    %v78 = vpack.c.bf16 %v66, %v60
    %v79 = vpack.c.bf16 %v67, %v61
    %v80 = vld [vmem:[#allocation5] sm:$0xf]
    %v81 = vld [vmem:[#allocation5 + $0x4] sm:$0xf]
    %v82 = vld [vmem:[#allocation5 + $0x8] sm:$0xf]
    %v83 = vld [vmem:[#allocation5 + $0xc] sm:$0xf]
    %v84 = vld [vmem:[#allocation5 + $0x10] sm:$0xf]
    %v85 = vld [vmem:[#allocation5 + $0x14] sm:$0xf]
    %v86 = vld [vmem:[#allocation5 + $0x18] sm:$0xf]
    %v87 = vld [vmem:[#allocation5 + $0x1c] sm:$0xf]
    %v88 = vld [vmem:[#allocation5 + $0x20] sm:$0xf]
    %v89 = vld [vmem:[#allocation5 + $0x24] sm:$0xf]
    %v90 = vld [vmem:[#allocation5 + $0x28] sm:$0xf]
    %v91 = vld [vmem:[#allocation5 + $0x2c] sm:$0xf]
    %v92 = vld [vmem:[#allocation5 + $0x30] sm:$0xf]
    %v93 = vld [vmem:[#allocation5 + $0x34] sm:$0xf]
    %v94 = vld [vmem:[#allocation5 + $0x38] sm:$0xf]
    %v95 = vld [vmem:[#allocation5 + $0x3c] sm:$0xf]
    %v96 = vld [vmem:[#allocation5 + $0x40] sm:$0xf]
    %v97 = vld [vmem:[#allocation5 + $0x44] sm:$0xf]
    %v98 = vld [vmem:[#allocation5 + $0x48] sm:$0xf]
    %v99 = vld [vmem:[#allocation5 + $0x4c] sm:$0xf]
    %v100 = vld [vmem:[#allocation5 + $0x50] sm:$0xf]
    %v101 = vld [vmem:[#allocation5 + $0x54] sm:$0xf]
    %v102 = vld [vmem:[#allocation5 + $0x58] sm:$0xf]
    %v103 = vld [vmem:[#allocation5 + $0x5c] sm:$0xf]
    %v104 = vld [vmem:[#allocation5 + $0x60] sm:$0xf]
    %v105 = vld [vmem:[#allocation5 + $0x64] sm:$0xf]
    %v106 = vld [vmem:[#allocation5 + $0x68] sm:$0xf]
    %v107 = vld [vmem:[#allocation5 + $0x6c] sm:$0xf]
    %v108 = vld [vmem:[#allocation5 + $0x70] sm:$0xf]
    %v109 = vld [vmem:[#allocation5 + $0x74] sm:$0xf]
    %v110 = vld [vmem:[#allocation5 + $0x78] sm:$0xf]
    %v111 = vld [vmem:[#allocation5 + $0x7c] sm:$0xf]
    %v112 = vld [vmem:[#allocation5 + $0x80] sm:$0xf]
    %v113 = vld [vmem:[#allocation5 + $0x84] sm:$0xf]
    %v114 = vld [vmem:[#allocation5 + $0x88] sm:$0xf]
    %v115 = vld [vmem:[#allocation5 + $0x8c] sm:$0xf]
    %v116 = vld [vmem:[#allocation5 + $0x90] sm:$0xf]
    %v117 = vld [vmem:[#allocation5 + $0x94] sm:$0xf]
    %v118 = vld [vmem:[#allocation5 + $0x98] sm:$0xf]
    %v119 = vld [vmem:[#allocation5 + $0x9c] sm:$0xf]
    %v120 = vld [vmem:[#allocation5 + $0xa0] sm:$0xf]
    %v121 = vld [vmem:[#allocation5 + $0xa4] sm:$0xf]
    %v122 = vld [vmem:[#allocation5 + $0xa8] sm:$0xf]
    %v123 = vld [vmem:[#allocation5 + $0xac] sm:$0xf]
    %v124 = vld [vmem:[#allocation5 + $0xb0] sm:$0xf]
    %v125 = vld [vmem:[#allocation5 + $0xb4] sm:$0xf]
    %v126 = vld [vmem:[#allocation5 + $0xb8] sm:$0xf]
    %v127 = vld [vmem:[#allocation5 + $0xbc] sm:$0xf]
    %v128 = vld [vmem:[#allocation5 + $0xc0] sm:$0xf]
    %v129 = vld [vmem:[#allocation5 + $0xc4] sm:$0xf]
    %v130 = vld [vmem:[#allocation5 + $0xc8] sm:$0xf]
    %v131 = vld [vmem:[#allocation5 + $0xcc] sm:$0xf]
    %v132 = vld [vmem:[#allocation5 + $0xd0] sm:$0xf]
    %v133 = vld [vmem:[#allocation5 + $0xd4] sm:$0xf]
    %v134 = vld [vmem:[#allocation5 + $0xd8] sm:$0xf]
    %v135 = vld [vmem:[#allocation5 + $0xdc] sm:$0xf]
    %v136 = vld [vmem:[#allocation5 + $0xe0] sm:$0xf]
    %v137 = vld [vmem:[#allocation5 + $0xe4] sm:$0xf]
    %v138 = vld [vmem:[#allocation5 + $0xe8] sm:$0xf]
    %v139 = vld [vmem:[#allocation5 + $0xec] sm:$0xf]
    %v140 = vld [vmem:[#allocation5 + $0xf0] sm:$0xf]
    %v141 = vld [vmem:[#allocation5 + $0xf4] sm:$0xf]
    %v142 = vld [vmem:[#allocation5 + $0xf8] sm:$0xf]
    %v143 = vld [vmem:[#allocation5 + $0xfc] sm:$0xf]
    %v144 = vld [vmem:[#allocation5 + $0x100] sm:$0xf]
    %v145 = vld [vmem:[#allocation5 + $0x104] sm:$0xf]
    %v146 = vld [vmem:[#allocation5 + $0x108] sm:$0xf]
    %v147 = vld [vmem:[#allocation5 + $0x10c] sm:$0xf]
    %v148 = vld [vmem:[#allocation5 + $0x110] sm:$0xf]
    %v149 = vld [vmem:[#allocation5 + $0x114] sm:$0xf]
    %v150 = vld [vmem:[#allocation5 + $0x118] sm:$0xf]
    %v151 = vld [vmem:[#allocation5 + $0x11c] sm:$0xf]
    %v152 = vld [vmem:[#allocation5 + $0x120] sm:$0xf]
    %v153 = vld [vmem:[#allocation5 + $0x124] sm:$0xf]
    %v154 = vld [vmem:[#allocation5 + $0x128] sm:$0xf]
    %v155 = vld [vmem:[#allocation5 + $0x12c] sm:$0xf]
    %v156 = vld [vmem:[#allocation5 + $0x130] sm:$0xf]
    %v157 = vld [vmem:[#allocation5 + $0x134] sm:$0xf]
    %v158 = vld [vmem:[#allocation5 + $0x138] sm:$0xf]
    %v159 = vld [vmem:[#allocation5 + $0x13c] sm:$0xf]
    %v160 = vld [vmem:[#allocation5 + $0x140] sm:$0xf]
    %v161 = vld [vmem:[#allocation5 + $0x144] sm:$0xf]
    %v162 = vld [vmem:[#allocation5 + $0x148] sm:$0xf]
    %v163 = vld [vmem:[#allocation5 + $0x14c] sm:$0xf]
    %v164 = vld [vmem:[#allocation5 + $0x150] sm:$0xf]
    %v165 = vld [vmem:[#allocation5 + $0x154] sm:$0xf]
    %v166 = vld [vmem:[#allocation5 + $0x158] sm:$0xf]
    %v167 = vld [vmem:[#allocation5 + $0x15c] sm:$0xf]
    %v168 = vld [vmem:[#allocation5 + $0x160] sm:$0xf]
    %v169 = vld [vmem:[#allocation5 + $0x164] sm:$0xf]
    %v170 = vld [vmem:[#allocation5 + $0x168] sm:$0xf]
    %v171 = vld [vmem:[#allocation5 + $0x16c] sm:$0xf]
    %v172 = vld [vmem:[#allocation5 + $0x170] sm:$0xf]
    %v173 = vld [vmem:[#allocation5 + $0x174] sm:$0xf]
    %v174 = vld [vmem:[#allocation5 + $0x178] sm:$0xf]
    %v175 = vld [vmem:[#allocation5 + $0x17c] sm:$0xf]
    %v176 = vld [vmem:[%s2] sm:$0x1]
    %v178 = vlaneseq
    %v179 = vshrl.u32 %v178, 7
    %v180 = vsub.s32 0, %v179
    %v181 = vrot.slane %v176, %v180
    %v279 = vunpack.c.l.b16 %v80
    %v280 = vunpack.c.l.b16 %v81
    %v281 = vunpack.c.l.b16 %v82
    %v282 = vunpack.c.l.b16 %v83
    %v283 = vunpack.c.l.b16 %v84
    %v284 = vunpack.c.l.b16 %v85
    %v285 = vunpack.c.l.b16 %v86
    %v286 = vunpack.c.l.b16 %v87
    %v287 = vunpack.c.l.b16 %v88
    %v288 = vunpack.c.l.b16 %v89
    %v289 = vunpack.c.l.b16 %v90
    %v290 = vunpack.c.l.b16 %v91
    %v291 = vunpack.c.l.b16 %v92
    %v292 = vunpack.c.l.b16 %v93
    %v293 = vunpack.c.l.b16 %v94
    %v294 = vunpack.c.l.b16 %v95
    %v295 = vunpack.c.l.b16 %v96
    %v296 = vunpack.c.l.b16 %v97
    %v297 = vunpack.c.l.b16 %v98
    %v298 = vunpack.c.l.b16 %v99
    %v299 = vunpack.c.l.b16 %v100
    %v300 = vunpack.c.l.b16 %v101
    %v301 = vunpack.c.l.b16 %v102
    %v302 = vunpack.c.l.b16 %v103
    %v303 = vunpack.c.l.b16 %v104
    %v304 = vunpack.c.l.b16 %v105
    %v305 = vunpack.c.l.b16 %v106
    %v306 = vunpack.c.l.b16 %v107
    %v307 = vunpack.c.l.b16 %v108
    %v308 = vunpack.c.l.b16 %v109
    %v309 = vunpack.c.l.b16 %v110
    %v310 = vunpack.c.l.b16 %v111
    %v311 = vunpack.c.l.b16 %v112
    %v312 = vunpack.c.l.b16 %v113
    %v313 = vunpack.c.l.b16 %v114
    %v314 = vunpack.c.l.b16 %v115
    %v315 = vunpack.c.l.b16 %v116
    %v316 = vunpack.c.l.b16 %v117
    %v317 = vunpack.c.l.b16 %v118
    %v318 = vunpack.c.l.b16 %v119
    %v319 = vunpack.c.l.b16 %v120
    %v320 = vunpack.c.l.b16 %v121
    %v321 = vunpack.c.l.b16 %v122
    %v322 = vunpack.c.l.b16 %v123
    %v323 = vunpack.c.l.b16 %v124
    %v324 = vunpack.c.l.b16 %v125
    %v325 = vunpack.c.l.b16 %v126
    %v326 = vunpack.c.l.b16 %v127
    %v327 = vunpack.c.l.b16 %v128
    %v328 = vunpack.c.l.b16 %v129
    %v329 = vunpack.c.l.b16 %v130
    %v330 = vunpack.c.l.b16 %v131
    %v331 = vunpack.c.l.b16 %v132
    %v332 = vunpack.c.l.b16 %v133
    %v333 = vunpack.c.l.b16 %v134
    %v334 = vunpack.c.l.b16 %v135
    %v335 = vunpack.c.l.b16 %v136
    %v336 = vunpack.c.l.b16 %v137
    %v337 = vunpack.c.l.b16 %v138
    %v338 = vunpack.c.l.b16 %v139
    %v339 = vunpack.c.l.b16 %v140
    %v340 = vunpack.c.l.b16 %v141
    %v341 = vunpack.c.l.b16 %v142
    %v342 = vunpack.c.l.b16 %v143
    %v343 = vunpack.c.l.b16 %v144
    %v344 = vunpack.c.l.b16 %v145
    %v345 = vunpack.c.l.b16 %v146
    %v346 = vunpack.c.l.b16 %v147
    %v347 = vunpack.c.l.b16 %v148
    %v348 = vunpack.c.l.b16 %v149
    %v349 = vunpack.c.l.b16 %v150
    %v350 = vunpack.c.l.b16 %v151
    %v351 = vunpack.c.l.b16 %v152
    %v352 = vunpack.c.l.b16 %v153
    %v353 = vunpack.c.l.b16 %v154
    %v354 = vunpack.c.l.b16 %v155
    %v355 = vunpack.c.l.b16 %v156
    %v356 = vunpack.c.l.b16 %v157
    %v357 = vunpack.c.l.b16 %v158
    %v358 = vunpack.c.l.b16 %v159
    %v359 = vunpack.c.l.b16 %v160
    %v360 = vunpack.c.l.b16 %v161
    %v361 = vunpack.c.l.b16 %v162
    %v362 = vunpack.c.l.b16 %v163
    %v363 = vunpack.c.l.b16 %v164
    %v364 = vunpack.c.l.b16 %v165
    %v365 = vunpack.c.l.b16 %v166
    %v366 = vunpack.c.l.b16 %v167
    %v367 = vunpack.c.l.b16 %v168
    %v368 = vunpack.c.l.b16 %v169
    %v369 = vunpack.c.l.b16 %v170
    %v370 = vunpack.c.l.b16 %v171
    %v371 = vunpack.c.l.b16 %v172
    %v372 = vunpack.c.l.b16 %v173
    %v373 = vunpack.c.l.b16 %v174
    %v374 = vunpack.c.l.b16 %v175
    %v375 = vpack.c.b16 %v280, %v279
    %v376 = vpack.c.b16 %v282, %v281
    %v377 = vpack.c.b16 %v284, %v283
    %v378 = vpack.c.b16 %v286, %v285
    %v379 = vpack.c.b16 %v288, %v287
    %v380 = vpack.c.b16 %v290, %v289
    %v381 = vpack.c.b16 %v292, %v291
    %v382 = vpack.c.b16 %v294, %v293
    %v383 = vpack.c.b16 %v296, %v295
    %v384 = vpack.c.b16 %v298, %v297
    %v385 = vpack.c.b16 %v300, %v299
    %v386 = vpack.c.b16 %v302, %v301
    %v387 = vpack.c.b16 %v304, %v303
    %v388 = vpack.c.b16 %v306, %v305
    %v389 = vpack.c.b16 %v308, %v307
    %v390 = vpack.c.b16 %v310, %v309
    %v391 = vpack.c.b16 %v312, %v311
    %v392 = vpack.c.b16 %v314, %v313
    %v393 = vpack.c.b16 %v316, %v315
    %v394 = vpack.c.b16 %v318, %v317
    %v395 = vpack.c.b16 %v320, %v319
    %v396 = vpack.c.b16 %v322, %v321
    %v397 = vpack.c.b16 %v324, %v323
    %v398 = vpack.c.b16 %v326, %v325
    %v399 = vpack.c.b16 %v328, %v327
    %v400 = vpack.c.b16 %v330, %v329
    %v401 = vpack.c.b16 %v332, %v331
    %v402 = vpack.c.b16 %v334, %v333
    %v403 = vpack.c.b16 %v336, %v335
    %v404 = vpack.c.b16 %v338, %v337
    %v405 = vpack.c.b16 %v340, %v339
    %v406 = vpack.c.b16 %v342, %v341
    %v407 = vpack.c.b16 %v344, %v343
    %v408 = vpack.c.b16 %v346, %v345
    %v409 = vpack.c.b16 %v348, %v347
    %v410 = vpack.c.b16 %v350, %v349
    %v411 = vpack.c.b16 %v352, %v351
    %v412 = vpack.c.b16 %v354, %v353
    %v413 = vpack.c.b16 %v356, %v355
    %v414 = vpack.c.b16 %v358, %v357
    %v415 = vpack.c.b16 %v360, %v359
    %v416 = vpack.c.b16 %v362, %v361
    %v417 = vpack.c.b16 %v364, %v363
    %v418 = vpack.c.b16 %v366, %v365
    %v419 = vpack.c.b16 %v368, %v367
    %v420 = vpack.c.b16 %v370, %v369
    %v421 = vpack.c.b16 %v372, %v371
    %v422 = vpack.c.b16 %v374, %v373
    %471 = vmatprep.subr.bf16.mxu0 0
    %472 = vmatpush1.bf16.msra.mxu0 %v375
    %473 = vmatprep.subr.bf16.mxu0 0
    %474 = vmatpush1.bf16.msra.mxu0 %v376
    %475 = vmatprep.subr.bf16.mxu0 0
    %476 = vmatpush1.bf16.msra.mxu0 %v377
    %477 = vmatprep.subr.bf16.mxu0 0
    %478 = vmatpush1.bf16.msra.mxu0 %v378
    %479 = vmatprep.subr.bf16.mxu0 0
    %480 = vmatpush1.bf16.msra.mxu0 %v379
    %481 = vmatprep.subr.bf16.mxu0 0
    %482 = vmatpush1.bf16.msra.mxu0 %v380
    %483 = vmatprep.subr.bf16.mxu0 0
    %484 = vmatpush1.bf16.msra.mxu0 %v381
    %485 = vmatprep.subr.bf16.mxu0 0
    %486 = vmatpush1.bf16.msra.mxu0 %v382
    %487 = vmatprep.subr.bf16.mxu0 0
    %488 = vmatpush1.bf16.msra.mxu0 %v383
    %489 = vmatprep.subr.bf16.mxu0 0
    %490 = vmatpush1.bf16.msra.mxu0 %v384
    %491 = vmatprep.subr.bf16.mxu0 0
    %492 = vmatpush1.bf16.msra.mxu0 %v385
    %493 = vmatprep.subr.bf16.mxu0 0
    %494 = vmatpush1.bf16.msra.mxu0 %v386
    %495 = vmatprep.subr.bf16.mxu0 0
    %496 = vmatpush1.bf16.msra.mxu0 %v387
    %497 = vmatprep.subr.bf16.mxu0 0
    %498 = vmatpush1.bf16.msra.mxu0 %v388
    %499 = vmatprep.subr.bf16.mxu0 0
    %500 = vmatpush1.bf16.msra.mxu0 %v389
    %501 = vmatprep.subr.bf16.mxu0 0
    %502 = vmatpush1.bf16.msra.mxu0 %v390
    %503 = vmatprep.mubr.bf16.mxu0 %v69
    %504 = vmatmul.mubr.bf16.gmra.mrb[0].mxu0 %v68
    %v505 = vpop.f32.mrb[0].mxu0
    %v506 = vadd.f32 %v181, %v505
    %v507 = vpop.f32.mrb[0].mxu0
    %v508 = vpop.f32.mrb[0].mxu0
    %v509 = vadd.f32 %v181, %v508
    %v510 = vpop.f32.mrb[0].mxu0
    %511 = vmatprep.mubr.bf16.mxu0 %v75
    %512 = vmatmul.mubr.bf16.gmra.mrb[0].mxu0 %v74
    %v513 = vpop.f32.mrb[0].mxu0
    %v514 = vadd.f32 %v181, %v513
    %v515 = vpop.f32.mrb[0].mxu0
    %v516 = vpop.f32.mrb[0].mxu0
    %v517 = vadd.f32 %v181, %v516
    %v518 = vpop.f32.mrb[0].mxu0
    %519 = vdwg.mxu0
    %520 = vmatprep.subr.bf16.mxu0 0
    %521 = vmatpush1.bf16.msra.mxu0 %v391
    %522 = vmatprep.subr.bf16.mxu0 0
    %523 = vmatpush1.bf16.msra.mxu0 %v392
    %524 = vmatprep.subr.bf16.mxu0 0
    %525 = vmatpush1.bf16.msra.mxu0 %v393
    %526 = vmatprep.subr.bf16.mxu0 0
    %527 = vmatpush1.bf16.msra.mxu0 %v394
    %528 = vmatprep.subr.bf16.mxu0 0
    %529 = vmatpush1.bf16.msra.mxu0 %v395
    %530 = vmatprep.subr.bf16.mxu0 0
    %531 = vmatpush1.bf16.msra.mxu0 %v396
    %532 = vmatprep.subr.bf16.mxu0 0
    %533 = vmatpush1.bf16.msra.mxu0 %v397
    %534 = vmatprep.subr.bf16.mxu0 0
    %535 = vmatpush1.bf16.msra.mxu0 %v398
    %536 = vmatprep.subr.bf16.mxu0 0
    %537 = vmatpush1.bf16.msra.mxu0 %v399
    %538 = vmatprep.subr.bf16.mxu0 0
    %539 = vmatpush1.bf16.msra.mxu0 %v400
    %540 = vmatprep.subr.bf16.mxu0 0
    %541 = vmatpush1.bf16.msra.mxu0 %v401
    %542 = vmatprep.subr.bf16.mxu0 0
    %543 = vmatpush1.bf16.msra.mxu0 %v402
    %544 = vmatprep.subr.bf16.mxu0 0
    %545 = vmatpush1.bf16.msra.mxu0 %v403
    %546 = vmatprep.subr.bf16.mxu0 0
    %547 = vmatpush1.bf16.msra.mxu0 %v404
    %548 = vmatprep.subr.bf16.mxu0 0
    %549 = vmatpush1.bf16.msra.mxu0 %v405
    %550 = vmatprep.subr.bf16.mxu0 0
    %551 = vmatpush1.bf16.msra.mxu0 %v406
    %552 = vmatprep.mubr.bf16.mxu0 %v71
    %553 = vmatmul.mubr.bf16.gmra.mrb[0].mxu0 %v70
    %v554 = vpop.f32.mrb[0].mxu0
    %v555 = vadd.f32 %v506, %v554
    %v556 = vpop.f32.mrb[0].mxu0
    %v557 = vpop.f32.mrb[0].mxu0
    %v558 = vadd.f32 %v509, %v557
    %v559 = vpop.f32.mrb[0].mxu0
    %560 = vmatprep.mubr.bf16.mxu0 %v77
    %561 = vmatmul.mubr.bf16.gmra.mrb[0].mxu0 %v76
    %v562 = vpop.f32.mrb[0].mxu0
    %v563 = vadd.f32 %v514, %v562
    %v564 = vpop.f32.mrb[0].mxu0
    %v565 = vpop.f32.mrb[0].mxu0
    %v566 = vadd.f32 %v517, %v565
    %v567 = vpop.f32.mrb[0].mxu0
    %568 = vdwg.mxu0
    %569 = vmatprep.subr.bf16.mxu0 0
    %570 = vmatpush1.bf16.msra.mxu0 %v407
    %571 = vmatprep.subr.bf16.mxu0 0
    %572 = vmatpush1.bf16.msra.mxu0 %v408
    %573 = vmatprep.subr.bf16.mxu0 0
    %574 = vmatpush1.bf16.msra.mxu0 %v409
    %575 = vmatprep.subr.bf16.mxu0 0
    %576 = vmatpush1.bf16.msra.mxu0 %v410
    %577 = vmatprep.subr.bf16.mxu0 0
    %578 = vmatpush1.bf16.msra.mxu0 %v411
    %579 = vmatprep.subr.bf16.mxu0 0
    %580 = vmatpush1.bf16.msra.mxu0 %v412
    %581 = vmatprep.subr.bf16.mxu0 0
    %582 = vmatpush1.bf16.msra.mxu0 %v413
    %583 = vmatprep.subr.bf16.mxu0 0
    %584 = vmatpush1.bf16.msra.mxu0 %v414
    %585 = vmatprep.subr.bf16.mxu0 0
    %586 = vmatpush1.bf16.msra.mxu0 %v415
    %587 = vmatprep.subr.bf16.mxu0 0
    %588 = vmatpush1.bf16.msra.mxu0 %v416
    %589 = vmatprep.subr.bf16.mxu0 0
    %590 = vmatpush1.bf16.msra.mxu0 %v417
    %591 = vmatprep.subr.bf16.mxu0 0
    %592 = vmatpush1.bf16.msra.mxu0 %v418
    %593 = vmatprep.subr.bf16.mxu0 0
    %594 = vmatpush1.bf16.msra.mxu0 %v419
    %595 = vmatprep.subr.bf16.mxu0 0
    %596 = vmatpush1.bf16.msra.mxu0 %v420
    %597 = vmatprep.subr.bf16.mxu0 0
    %598 = vmatpush1.bf16.msra.mxu0 %v421
    %599 = vmatprep.subr.bf16.mxu0 0
    %600 = vmatpush1.bf16.msra.mxu0 %v422
    %601 = vmatprep.mubr.bf16.mxu0 %v73
    %602 = vmatmul.mubr.bf16.gmra.mrb[0].mxu0 %v72
    %v603 = vpop.f32.mrb[0].mxu0
    %v604 = vadd.f32 %v555, %v603
    %v605 = vpop.f32.mrb[0].mxu0
    %v606 = vpop.f32.mrb[0].mxu0
    %v607 = vadd.f32 %v558, %v606
    %v608 = vpop.f32.mrb[0].mxu0
    %609 = vmatprep.mubr.bf16.mxu0 %v79
    %610 = vmatmul.mubr.bf16.gmra.mrb[0].mxu0 %v78
    %v611 = vpop.f32.mrb[0].mxu0
    %v612 = vadd.f32 %v563, %v611
    %v613 = vpop.f32.mrb[0].mxu0
    %v614 = vpop.f32.mrb[0].mxu0
    %v615 = vadd.f32 %v566, %v614
    %v616 = vpop.f32.mrb[0].mxu0
    %617 = vdwg.mxu0
    %618 = vst [vmem:[#allocation7] sm:$0xff] %v604
    %619 = vst [vmem:[#allocation7 + $0x8] sm:$0xff] %v607
    %620 = vst [vmem:[#allocation7 + $0x10] sm:$0xff] %v612
    %621 = vst [vmem:[#allocation7 + $0x18] sm:$0xff] %v615
    // Predicated region
    $region22: #{tpu_custom_call.1} parent=1 // pred_check
      _
    $region23: #{tpu_custom_call.1} parent=1 // pred_check_branch
      %623 = sbr.rel (0) target = $region25
    $region24: #{tpu_custom_call.1} parent=1 // pred_region
      %s625 = ssub.s32 512, 512
      %626 = vsyncadd [#allocation4], %s625
      %s627 = sshll.u32 [#allocation7], 4
      %s628 = int_to_ptr.vmem [resolvable:$true] %s627
      %633 = dma.vmem_to_hbm [thread:$0]  %s628, 512, %s3, [#allocation4], 128, 128, 8
    $region25: #{tpu_custom_call.1} parent=1 // pred_fallthru
      _
    // Predicated region
    $region26: #{tpu_custom_call.1} parent=1 // pred_check
      _
    $region27: #{tpu_custom_call.1} parent=1 // pred_check_branch
      %635 = sbr.rel (0) target = $region29
    $region28: #{tpu_custom_call.1} parent=1 // pred_region
      %636 = dma.done [#allocation4], 512
    $region29: #{tpu_custom_call.1} parent=1 // pred_fallthru
      _
    %637 = vsyncpa [#allocation3], 1
    %638 = vsyncpa [#allocation6], 1
    %639 = vsyncpa [#allocation4], 1

</llo_original>
